<compile_context>
chip_gen: v7x
topology: tpu7x:2x2x1
jax: 0.10.0
libtpu: 0.0.40
codegen_flags: <defaults>
</compile_context>

<pallas_src>
import math

import jax
import jax.numpy as jnp
import numpy as np
from jax.experimental import pallas as pl
from jax.experimental.pallas import tpu as pltpu

LEAKY_SLOPE = 0.01   # nn.LeakyReLU default negative_slope
LN_EPS = 1e-5        # nn.LayerNorm default eps
NORM_EPS = 1e-12     # F.normalize default eps


def _round_up(a, b):
    return (a + b - 1) // b * b


def matryoshka_kernel(x_ref, w1_ref, b1_ref, g_ref, be_ref, w2_ref, b2_ref, out_ref):
    H = w1_ref.shape[1]  # static Python int (block shape)

    # In-kernel bf16 cast of the activations feeding the MXU (no host-side convert
    # pass); accumulation stays f32 via preferred_element_type.
    x = x_ref[...].astype(jnp.bfloat16)

    # base_transform: Linear(I, 2I) on the MXU + bias.
    h = jnp.dot(x, w1_ref[...], preferred_element_type=jnp.float32)
    h = h + b1_ref[...]

    # LeakyReLU (VPU).
    h = jnp.where(h >= 0.0, h, LEAKY_SLOPE * h)

    # Two-pass LayerNorm: one extra XLU reduction (free -- kernel is DMA-bound) and
    # numerically robust against |mean| >> std cancellation.
    mean = jnp.mean(h, axis=-1, keepdims=True)
    hc = h - mean
    var = jnp.mean(hc * hc, axis=-1, keepdims=True)
    h = hc * jax.lax.rsqrt(var + LN_EPS)
    h = h * g_ref[...] + be_ref[...]

    # blocks[0]: Linear(2I, D0) on the MXU (bf16 in, f32 accumulate) + bias.
    delta = jnp.dot(h.astype(w2_ref.dtype), w2_ref[...],
                    preferred_element_type=jnp.float32)
    delta = delta + b2_ref[...]

    # F.normalize(cat([h, delta], 1), p=2, dim=1) without materializing the concat:
    # shared rsqrt of the clamped sum of squares (clamp on sumsq with eps^2 preserves
    # the max(||emb||, 1e-12) semantics), then store the two halves in place.
    sumsq = (jnp.sum(h * h, axis=-1, keepdims=True)
             + jnp.sum(delta * delta, axis=-1, keepdims=True))
    inv_norm = jax.lax.rsqrt(jnp.maximum(sumsq, NORM_EPS * NORM_EPS))
    out_ref[:, :H] = (h * inv_norm).astype(out_ref.dtype)
    out_ref[:, H:] = (delta * inv_norm).astype(out_ref.dtype)


def matryoshka_forward(x, params, dimension_levels, *, tb_max=1024,
                       out_dtype=jnp.float32):
    """Pallas wrapper. Returns {dim_level: normalized nested embedding}.

    out_dtype=jnp.bfloat16 halves the dominant output writeback traffic if the
    consumer accepts bf16 embeddings; normalization math stays f32 either way.
    """
    w1, b1, gamma, beta, w2, b2 = params
    B, I = x.shape
    H = w1.shape[1]          # 2 * input_dim
    D0 = w2.shape[1]         # dimension_levels[0] - 0
    out_dim = H + D0

    # Batch tile: largest tile <= tb_max, multiple of 16 sublanes (safe for f32 and
    # bf16 inputs). No host-side padding: the grid is ceil(B/TB) and Pallas masks
    # the ragged last block's boundary stores.
    TB = min(tb_max, _round_up(B, 16))
    # Prefer >= 2 tiles so the "parallel" axis can shard across v7x's 2 TensorCores
    # (and so DMA/compute actually pipeline) whenever the batch is big enough.
    if pl.cdiv(B, TB) < 2 and B >= 32:
        TB = _round_up(pl.cdiv(B, 2), 16)
    grid = (pl.cdiv(B, TB),)

    out_itemsize = jnp.dtype(out_dtype).itemsize
    flops = 2 * B * I * H + 2 * B * H * D0
    transcendentals = 2 * B  # rsqrt for LayerNorm + rsqrt for L2 norm, per row
    bytes_accessed = int(
        B * I * x.dtype.itemsize                            # x
        + I * H * w1.dtype.itemsize + H * D0 * w2.dtype.itemsize   # W1, W2 (bf16)
        + 4 * (3 * H + D0)                                  # b1, gamma, beta, b2 (f32)
        + B * out_dim * out_itemsize                        # out
    )
    cost = pl.CostEstimate(flops=flops, transcendentals=transcendentals,
                           bytes_accessed=bytes_accessed)

    # Scoped-VMEM budget: double-buffered x/out tiles + params, with 2x headroom;
    # floored at v5e's 16 MiB default, capped well under every chip's physical VMEM.
    tile_bytes = TB * I * x.dtype.itemsize + TB * out_dim * out_itemsize
    param_bytes = (I * H * w1.dtype.itemsize + H * D0 * w2.dtype.itemsize
                   + 4 * (3 * H + D0))
    vmem_limit = int(min(max(4 * tile_bytes + 4 * param_bytes, 16 * 2**20),
                         40 * 2**20))

    out = pl.pallas_call(
        matryoshka_kernel,
        out_shape=jax.ShapeDtypeStruct((B, out_dim), out_dtype),
        grid_spec=pltpu.PrefetchScalarGridSpec(
            num_scalar_prefetch=0,
            grid=grid,
            in_specs=[
                pl.BlockSpec((TB, I), lambda i: (i, 0)),     # x tile (input dtype)
                pl.BlockSpec((I, H), lambda i: (0, 0)),      # W1 (in, out) bf16
                pl.BlockSpec((1, H), lambda i: (0, 0)),      # b1 (f32)
                pl.BlockSpec((1, H), lambda i: (0, 0)),      # LN gamma (f32)
                pl.BlockSpec((1, H), lambda i: (0, 0)),      # LN beta (f32)
                pl.BlockSpec((H, D0), lambda i: (0, 0)),     # W2 (in, out) bf16
                pl.BlockSpec((1, D0), lambda i: (0, 0)),     # b2 (f32)
            ],
            out_specs=pl.BlockSpec((TB, out_dim), lambda i: (i, 0)),
        ),
        compiler_params=pltpu.CompilerParams(
            dimension_semantics=("parallel",),
            vmem_limit_bytes=vmem_limit),
        cost_estimate=cost,
    )(x, w1, b1, gamma, beta, w2, b2)

    return {dimension_levels[0]: out}


def init_params(key, input_dim):
    """Deterministic init matching the module's parameter shapes.

    Linear weights/biases ~ U(-1/sqrt(fan_in), 1/sqrt(fan_in)) (PyTorch default),
    LayerNorm gamma=1, beta=0. Weights are stored transposed (in, out) and in bf16
    so the kernel feeds the MXU directly; biases / LN params stay f32.
    """
    I = input_dim
    H = 2 * I
    D0 = I  # single block: dimension_levels == [input_dim]
    k1, k2, k3, k4 = jax.random.split(key, 4)
    bound1 = 1.0 / math.sqrt(I)
    w1 = jax.random.uniform(k1, (I, H), jnp.float32, -bound1, bound1).astype(jnp.bfloat16)
    b1 = jax.random.uniform(k2, (1, H), jnp.float32, -bound1, bound1)
    gamma = jnp.ones((1, H), jnp.float32)
    beta = jnp.zeros((1, H), jnp.float32)
    bound2 = 1.0 / math.sqrt(H)
    w2 = jax.random.uniform(k3, (H, D0), jnp.float32, -bound2, bound2).astype(jnp.bfloat16)
    b2 = jax.random.uniform(k4, (1, D0), jnp.float32, -bound2, bound2)
    return (w1, b1, gamma, beta, w2, b2)


def reference_forward(x, params, dimension_levels):
    """Plain-JAX reference with the same mixed precision as the kernel."""
    w1, b1, gamma, beta, w2, b2 = params
    xb = x.astype(jnp.bfloat16).astype(jnp.float32)
    h = jnp.dot(xb, w1.astype(jnp.float32), precision=jax.lax.Precision.HIGHEST) + b1
    h = jnp.where(h >= 0.0, h, LEAKY_SLOPE * h)
    mean = jnp.mean(h, axis=-1, keepdims=True)
    var = jnp.mean(jnp.square(h - mean), axis=-1, keepdims=True)
    h = (h - mean) / jnp.sqrt(var + LN_EPS) * gamma + beta
    hb = h.astype(jnp.bfloat16).astype(jnp.float32)
    delta = jnp.dot(hb, w2.astype(jnp.float32), precision=jax.lax.Precision.HIGHEST) + b2
    emb = jnp.concatenate([h, delta], axis=-1)
    nrm = jnp.sqrt(jnp.sum(emb * emb, axis=-1, keepdims=True))
    return {dimension_levels[0]: emb / jnp.maximum(nrm, NORM_EPS)}


if __name__ == "__main__":
    input_dim = 128            # lane-aligned: H = 256, out_dim = 384 are 128-multiples
    dimension_levels = [128]   # single-block configuration (see NOTE above)

    key = jax.random.PRNGKey(0)
    k_x, k_p, k_x2 = jax.random.split(key, 3)
    params = init_params(k_p, input_dim)

    # Small shape: a single ragged tile (B=4 < TB=16) exercises masked boundary
    # stores with no host-side pad or trailing slice.
    x_small = jax.random.normal(k_x, (4, input_dim), dtype=jnp.float32)
    out_small = matryoshka_forward(x_small, params, dimension_levels)[dimension_levels[0]]
    out_small = jax.block_until_ready(out_small)
    ref_small = reference_forward(x_small, params, dimension_levels)[dimension_levels[0]]
    np.testing.assert_allclose(np.asarray(out_small), np.asarray(ref_small),
                               rtol=1e-3, atol=1e-3)
    assert out_small.shape == (4, 3 * input_dim)  # concat of LN output (2I) and delta (I)

    # Larger batch: splits into a 2-tile grid (TB=304) with a ragged last block --
    # exercises the pipelined multi-step "parallel" grid and the no-pad path.
    x_big = jax.random.normal(k_x2, (600, input_dim), dtype=jnp.float32)
    out_big = matryoshka_forward(x_big, params, dimension_levels)[dimension_levels[0]]
    out_big = jax.block_until_ready(out_big)
    ref_big = reference_forward(x_big, params, dimension_levels)[dimension_levels[0]]
    np.testing.assert_allclose(np.asarray(out_big), np.asarray(ref_big),
                               rtol=1e-3, atol=1e-3)
    assert out_big.shape == (600, 3 * input_dim)

    print("KERNEL_OK")
</pallas_src>

<mosaic_0001>
module attributes {stable_mosaic.version = 11 : i64} {
  func.func @matryoshka_kernel(%arg0: i32, %arg1: memref<16x128xf32, #tpu.memory_space<vmem>>, %arg2: memref<128x256xbf16, #tpu.memory_space<vmem>>, %arg3: memref<1x256xf32, #tpu.memory_space<vmem>>, %arg4: memref<1x256xf32, #tpu.memory_space<vmem>>, %arg5: memref<1x256xf32, #tpu.memory_space<vmem>>, %arg6: memref<256x128xbf16, #tpu.memory_space<vmem>>, %arg7: memref<1x128xf32, #tpu.memory_space<vmem>>, %arg8: memref<16x384xf32, #tpu.memory_space<vmem>>) attributes {dimension_semantics = [#tpu.dimension_semantics<parallel>], iteration_bounds = array<i64: 1>, scalar_prefetch = 0 : i64, scratch_operands = 0 : i64, tpu.core_type = #tpu.core_type<tc>, window_params = [{transform_indices = @transform_0, window_bounds = array<i64: 16, 128>}, {pipeline_mode = #tpu.pipeline_mode<synchronous>, transform_indices = @transform_1, window_bounds = array<i64: 128, 256>}, {pipeline_mode = #tpu.pipeline_mode<synchronous>, transform_indices = @transform_2, window_bounds = array<i64: 1, 256>}, {pipeline_mode = #tpu.pipeline_mode<synchronous>, transform_indices = @transform_3, window_bounds = array<i64: 1, 256>}, {pipeline_mode = #tpu.pipeline_mode<synchronous>, transform_indices = @transform_4, window_bounds = array<i64: 1, 256>}, {pipeline_mode = #tpu.pipeline_mode<synchronous>, transform_indices = @transform_5, window_bounds = array<i64: 256, 128>}, {pipeline_mode = #tpu.pipeline_mode<synchronous>, transform_indices = @transform_6, window_bounds = array<i64: 1, 128>}, {transform_indices = @transform_7, window_bounds = array<i64: 16, 384>}]} {
    %c0 = arith.constant 0 : index
    %c0_0 = arith.constant 0 : index
    %0 = vector.load %arg1[%c0, %c0_0] : memref<16x128xf32, #tpu.memory_space<vmem>>, vector<16x128xf32>
    %1 = arith.truncf %0 : vector<16x128xf32> to vector<16x128xbf16>
    %c0_1 = arith.constant 0 : index
    %c0_2 = arith.constant 0 : index
    %2 = vector.load %arg2[%c0_1, %c0_2] : memref<128x256xbf16, #tpu.memory_space<vmem>>, vector<128x256xbf16>
    %cst = arith.constant dense<0.000000e+00> : vector<16x256xf32>
    %3 = tpu.matmul %1, %2, %cst {dimension_numbers = #tpu.dot_dimension_numbers<[1], [0], [0], [1], [0, 0, 1, 1], [], []>} : vector<16x128xbf16>, vector<128x256xbf16>, vector<16x256xf32> -> vector<16x256xf32>
    %c0_3 = arith.constant 0 : index
    %c0_4 = arith.constant 0 : index
    %4 = vector.load %arg3[%c0_3, %c0_4] : memref<1x256xf32, #tpu.memory_space<vmem>>, vector<1x256xf32>
    %5 = vector.broadcast %4 : vector<1x256xf32> to vector<16x256xf32>
    %6 = arith.addf %3, %5 : vector<16x256xf32>
    %cst_5 = arith.constant 0.000000e+00 : f32
    %7 = vector.broadcast %cst_5 : f32 to vector<16x256xf32>
    %8 = arith.cmpf oge, %6, %7 : vector<16x256xf32>
    %cst_6 = arith.constant 0.00999999977 : f32
    %9 = vector.broadcast %cst_6 : f32 to vector<16x256xf32>
    %10 = arith.mulf %9, %6 : vector<16x256xf32>
    %11 = arith.select %8, %6, %10 : vector<16x256xi1>, vector<16x256xf32>
    %cst_7 = arith.constant dense<0.000000e+00> : vector<16xf32>
    %12 = vector.multi_reduction <add>, %11, %cst_7 [1] : vector<16x256xf32> to vector<16xf32>
    %13 = vector.shape_cast %12 : vector<16xf32> to vector<16x1xf32>
    %cst_8 = arith.constant 2.560000e+02 : f32
    %14 = vector.broadcast %cst_8 : f32 to vector<16x1xf32>
    %15 = arith.divf %13, %14 : vector<16x1xf32>
    %16 = vector.broadcast %15 : vector<16x1xf32> to vector<16x256xf32>
    %17 = arith.subf %11, %16 : vector<16x256xf32>
    %18 = arith.mulf %17, %17 : vector<16x256xf32>
    %cst_9 = arith.constant dense<0.000000e+00> : vector<16xf32>
    %19 = vector.multi_reduction <add>, %18, %cst_9 [1] : vector<16x256xf32> to vector<16xf32>
    %20 = vector.shape_cast %19 : vector<16xf32> to vector<16x1xf32>
    %cst_10 = arith.constant 2.560000e+02 : f32
    %21 = vector.broadcast %cst_10 : f32 to vector<16x1xf32>
    %22 = arith.divf %20, %21 : vector<16x1xf32>
    %cst_11 = arith.constant 9.99999974E-6 : f32
    %23 = vector.broadcast %cst_11 : f32 to vector<16x1xf32>
    %24 = arith.addf %22, %23 : vector<16x1xf32>
    %25 = math.rsqrt %24 : vector<16x1xf32>
    %26 = vector.broadcast %25 : vector<16x1xf32> to vector<16x256xf32>
    %27 = arith.mulf %17, %26 : vector<16x256xf32>
    %c0_12 = arith.constant 0 : index
    %c0_13 = arith.constant 0 : index
    %28 = vector.load %arg4[%c0_12, %c0_13] : memref<1x256xf32, #tpu.memory_space<vmem>>, vector<1x256xf32>
    %29 = vector.broadcast %28 : vector<1x256xf32> to vector<16x256xf32>
    %30 = arith.mulf %27, %29 : vector<16x256xf32>
    %c0_14 = arith.constant 0 : index
    %c0_15 = arith.constant 0 : index
    %31 = vector.load %arg5[%c0_14, %c0_15] : memref<1x256xf32, #tpu.memory_space<vmem>>, vector<1x256xf32>
    %32 = vector.broadcast %31 : vector<1x256xf32> to vector<16x256xf32>
    %33 = arith.addf %30, %32 : vector<16x256xf32>
    %34 = arith.truncf %33 : vector<16x256xf32> to vector<16x256xbf16>
    %c0_16 = arith.constant 0 : index
    %c0_17 = arith.constant 0 : index
    %35 = vector.load %arg6[%c0_16, %c0_17] : memref<256x128xbf16, #tpu.memory_space<vmem>>, vector<256x128xbf16>
    %cst_18 = arith.constant dense<0.000000e+00> : vector<16x128xf32>
    %36 = tpu.matmul %34, %35, %cst_18 {dimension_numbers = #tpu.dot_dimension_numbers<[1], [0], [0], [1], [0, 0, 1, 1], [], []>} : vector<16x256xbf16>, vector<256x128xbf16>, vector<16x128xf32> -> vector<16x128xf32>
    %c0_19 = arith.constant 0 : index
    %c0_20 = arith.constant 0 : index
    %37 = vector.load %arg7[%c0_19, %c0_20] : memref<1x128xf32, #tpu.memory_space<vmem>>, vector<1x128xf32>
    %38 = vector.broadcast %37 : vector<1x128xf32> to vector<16x128xf32>
    %39 = arith.addf %36, %38 : vector<16x128xf32>
    %40 = arith.mulf %33, %33 : vector<16x256xf32>
    %cst_21 = arith.constant dense<0.000000e+00> : vector<16xf32>
    %41 = vector.multi_reduction <add>, %40, %cst_21 [1] : vector<16x256xf32> to vector<16xf32>
    %42 = vector.shape_cast %41 : vector<16xf32> to vector<16x1xf32>
    %43 = arith.mulf %39, %39 : vector<16x128xf32>
    %cst_22 = arith.constant dense<0.000000e+00> : vector<16xf32>
    %44 = vector.multi_reduction <add>, %43, %cst_22 [1] : vector<16x128xf32> to vector<16xf32>
    %45 = vector.shape_cast %44 : vector<16xf32> to vector<16x1xf32>
    %46 = arith.addf %42, %45 : vector<16x1xf32>
    %cst_23 = arith.constant 1.000000e-24 : f32
    %47 = vector.broadcast %cst_23 : f32 to vector<16x1xf32>
    %48 = arith.maximumf %46, %47 : vector<16x1xf32>
    %49 = math.rsqrt %48 : vector<16x1xf32>
    %50 = vector.broadcast %49 : vector<16x1xf32> to vector<16x256xf32>
    %51 = arith.mulf %33, %50 : vector<16x256xf32>
    %c0_24 = arith.constant 0 : index
    %c0_25 = arith.constant 0 : index
    %52 = vector.load %arg8[%c0_24, %c0_25] : memref<16x384xf32, #tpu.memory_space<vmem>>, vector<16x256xf32>
    tpu.vector_store %arg8[%c0_24, %c0_25], %51 {strides = array<i32>} : memref<16x384xf32, #tpu.memory_space<vmem>>, vector<16x256xf32>,
    %53 = vector.broadcast %49 : vector<16x1xf32> to vector<16x128xf32>
    %54 = arith.mulf %39, %53 : vector<16x128xf32>
    %c0_26 = arith.constant 0 : index
    %c256 = arith.constant 256 : index
    %55 = vector.load %arg8[%c0_26, %c256] : memref<16x384xf32, #tpu.memory_space<vmem>>, vector<16x128xf32>
    tpu.vector_store %arg8[%c0_26, %c256], %54 {strides = array<i32>} : memref<16x384xf32, #tpu.memory_space<vmem>>, vector<16x128xf32>,
    return
  }
  func.func @transform_0(%arg0: i32) -> (i32, i32) {
    %c0_i32 = arith.constant 0 : i32
    %c0_i32_0 = arith.constant 0 : i32
    return %arg0, %c0_i32 : i32, i32
  }
  func.func @transform_1(%arg0: i32) -> (i32, i32) {
    %c0_i32 = arith.constant 0 : i32
    %c0_i32_0 = arith.constant 0 : i32
    %c0_i32_1 = arith.constant 0 : i32
    return %c0_i32, %c0_i32_0 : i32, i32
  }
  func.func @transform_2(%arg0: i32) -> (i32, i32) {
    %c0_i32 = arith.constant 0 : i32
    %c0_i32_0 = arith.constant 0 : i32
    %c0_i32_1 = arith.constant 0 : i32
    return %c0_i32, %c0_i32_0 : i32, i32
  }
  func.func @transform_3(%arg0: i32) -> (i32, i32) {
    %c0_i32 = arith.constant 0 : i32
    %c0_i32_0 = arith.constant 0 : i32
    %c0_i32_1 = arith.constant 0 : i32
    return %c0_i32, %c0_i32_0 : i32, i32
  }
  func.func @transform_4(%arg0: i32) -> (i32, i32) {
    %c0_i32 = arith.constant 0 : i32
    %c0_i32_0 = arith.constant 0 : i32
    %c0_i32_1 = arith.constant 0 : i32
    return %c0_i32, %c0_i32_0 : i32, i32
  }
  func.func @transform_5(%arg0: i32) -> (i32, i32) {
    %c0_i32 = arith.constant 0 : i32
    %c0_i32_0 = arith.constant 0 : i32
    %c0_i32_1 = arith.constant 0 : i32
    return %c0_i32, %c0_i32_0 : i32, i32
  }
  func.func @transform_6(%arg0: i32) -> (i32, i32) {
    %c0_i32 = arith.constant 0 : i32
    %c0_i32_0 = arith.constant 0 : i32
    %c0_i32_1 = arith.constant 0 : i32
    return %c0_i32, %c0_i32_0 : i32, i32
  }
  func.func @transform_7(%arg0: i32) -> (i32, i32) {
    %c0_i32 = arith.constant 0 : i32
    %c0_i32_0 = arith.constant 0 : i32
    return %arg0, %c0_i32 : i32, i32
  }
}

</mosaic_0001>

<llo_original>
// kernel: tpu_custom_call.1
$region0: #{tpu_custom_call.1}
  #allocation0 [shape = 'u32[]', space=smem, size = 0x4, offset = 0x4, fixed_abs, tag = 'smem constant byte address 0x4 - core index']
  #allocation1 [shape = 'u32[144,128]{1,0:T(1,128)}', space=vmem, size = 0x12000, scoped, tag = 'internal scratch']
  %s0 = inlined_call_operand.hbm [shape: f32[4,128], index: 0, kind: input, shape index: {}]
  %s1 = inlined_call_operand.hbm [shape: bf16[128,256], index: 1, kind: input, shape index: {}]
  %s2 = inlined_call_operand.vmem [shape: f32[1,256], index: 2, kind: input, shape index: {}]
  %s3 = inlined_call_operand.vmem [shape: f32[1,256], index: 3, kind: input, shape index: {}]
  %s4 = inlined_call_operand.vmem [shape: f32[1,256], index: 4, kind: input, shape index: {}]
  %s5 = inlined_call_operand.hbm [shape: bf16[256,128], index: 5, kind: input, shape index: {}]
  %s6 = inlined_call_operand.vmem [shape: f32[1,128], index: 6, kind: input, shape index: {}]
  %s7 = inlined_call_operand.hbm [shape: f32[4,384], index: 7, kind: output, shape index: {}]
  %s8 = sld [smem:[#allocation0]]
  $region50: #{tpu_custom_call.1} parent=0
    _
  %s10 = ssub.s32 1, %s8
  %s11 = scalar_select 0, %s10, %s8
  $region1: #{tpu_custom_call.1} parent=0
    #allocation2 [shape = 'u8[8192]{0}', space=vmem, size = 0x2000, scoped, tag = 'input window, operand 0, single buffered']
    #allocation3 [shape = 's32[1]{0}', space=sflag, size = 0x4, scoped, tag = 'scoped memory for tpu_custom_call.1']
    #allocation4 [shape = 's32[1]{0}', space=sflag, size = 0x4, scoped, tag = 'scoped memory for tpu_custom_call.1']
    #allocation5 [shape = 'u8[65536]{0}', space=vmem, size = 0x10000, scoped, tag = 'input window, operand 1, single buffered']
    #allocation6 [shape = 's32[1]{0}', space=sflag, size = 0x4, scoped, tag = 'scoped memory for tpu_custom_call.1']
    #allocation7 [shape = 'u8[65536]{0}', space=vmem, size = 0x10000, scoped, tag = 'input window, operand 5, single buffered']
    #allocation8 [shape = 'u8[24576]{0}', space=vmem, size = 0x6000, scoped, tag = 'output window, operand 0, single buffered']
    %12 = vsyncpa [#allocation3], 0
    %13 = vsyncpa [#allocation6], 0
    %14 = vsyncpa [#allocation4], 0
    // Predicated region
    $region2: #{tpu_custom_call.1} parent=1 // pred_check
      _
    $region3: #{tpu_custom_call.1} parent=1 // pred_check_branch
      %16 = sbr.rel (0) target = $region5
    $region4: #{tpu_custom_call.1} parent=1 // pred_region
      %s18 = ssub.s32 256, 64
      %19 = vsyncadd [#allocation3], %s18
      %s20 = sshll.u32 [#allocation2], 4
      %s21 = int_to_ptr.vmem [resolvable:$true] %s20
      %26 = dma.hbm_to_vmem [thread:$0]  %s0, 64, %s21, [#allocation3], 64, 64, 4
    $region5: #{tpu_custom_call.1} parent=1 // pred_fallthru
      _
    // Predicated region
    $region6: #{tpu_custom_call.1} parent=1 // pred_check
      _
    $region7: #{tpu_custom_call.1} parent=1 // pred_check_branch
      %28 = sbr.rel (0) target = $region9
    $region8: #{tpu_custom_call.1} parent=1 // pred_region
      %s30 = ssub.s32 2048, 2048
      %31 = vsyncadd [#allocation6], %s30
      %s32 = sshll.u32 [#allocation5], 4
      %s33 = int_to_ptr.vmem [resolvable:$true] %s32
      %38 = dma.hbm_to_vmem [thread:$0]  %s1, 2048, %s33, [#allocation6], 128, 128, 8
    $region9: #{tpu_custom_call.1} parent=1 // pred_fallthru
      _
    // Predicated region
    $region10: #{tpu_custom_call.1} parent=1 // pred_check
      _
    $region11: #{tpu_custom_call.1} parent=1 // pred_check_branch
      %40 = sbr.rel (0) target = $region13
    $region12: #{tpu_custom_call.1} parent=1 // pred_region
      _
    $region13: #{tpu_custom_call.1} parent=1 // pred_fallthru
      _
    // Predicated region
    $region14: #{tpu_custom_call.1} parent=1 // pred_check
      _
    $region15: #{tpu_custom_call.1} parent=1 // pred_check_branch
      %42 = sbr.rel (0) target = $region17
    $region16: #{tpu_custom_call.1} parent=1 // pred_region
      _
    $region17: #{tpu_custom_call.1} parent=1 // pred_fallthru
      _
    // Predicated region
    $region18: #{tpu_custom_call.1} parent=1 // pred_check
      _
    $region19: #{tpu_custom_call.1} parent=1 // pred_check_branch
      %44 = sbr.rel (0) target = $region21
    $region20: #{tpu_custom_call.1} parent=1 // pred_region
      _
    $region21: #{tpu_custom_call.1} parent=1 // pred_fallthru
      _
    // Predicated region
    $region22: #{tpu_custom_call.1} parent=1 // pred_check
      _
    $region23: #{tpu_custom_call.1} parent=1 // pred_check_branch
      %46 = sbr.rel (0) target = $region25
    $region24: #{tpu_custom_call.1} parent=1 // pred_region
      %s48 = ssub.s32 2048, 2048
      %49 = vsyncadd [#allocation6], %s48
      %s50 = sshll.u32 [#allocation7], 4
      %s51 = int_to_ptr.vmem [resolvable:$true] %s50
      %56 = dma.hbm_to_vmem [thread:$0]  %s5, 2048, %s51, [#allocation6], 64, 64, 4
    $region25: #{tpu_custom_call.1} parent=1 // pred_fallthru
      _
    // Predicated region
    $region26: #{tpu_custom_call.1} parent=1 // pred_check
      _
    $region27: #{tpu_custom_call.1} parent=1 // pred_check_branch
      %58 = sbr.rel (0) target = $region29
    $region28: #{tpu_custom_call.1} parent=1 // pred_region
      _
    $region29: #{tpu_custom_call.1} parent=1 // pred_fallthru
      _
    // Predicated region
    $region30: #{tpu_custom_call.1} parent=1 // pred_check
      _
    $region31: #{tpu_custom_call.1} parent=1 // pred_check_branch
      %60 = sbr.rel (0) target = $region33
    $region32: #{tpu_custom_call.1} parent=1 // pred_region
      %61 = dma.done [#allocation3], 256
    $region33: #{tpu_custom_call.1} parent=1 // pred_fallthru
      _
    // Predicated region
    $region34: #{tpu_custom_call.1} parent=1 // pred_check
      _
    $region35: #{tpu_custom_call.1} parent=1 // pred_check_branch
      %63 = sbr.rel (0) target = $region37
    $region36: #{tpu_custom_call.1} parent=1 // pred_region
      %64 = dma.done [#allocation6], 2048
    $region37: #{tpu_custom_call.1} parent=1 // pred_fallthru
      _
    // Predicated region
    $region38: #{tpu_custom_call.1} parent=1 // pred_check
      _
    $region39: #{tpu_custom_call.1} parent=1 // pred_check_branch
      %66 = sbr.rel (0) target = $region41
    $region40: #{tpu_custom_call.1} parent=1 // pred_region
      %67 = dma.done [#allocation6], 2048
    $region41: #{tpu_custom_call.1} parent=1 // pred_fallthru
      _
    %v69 = vld [vmem:[#allocation2] sm:$0xff]
    %v70 = vld [vmem:[#allocation2 + $0x8] sm:$0xff]
    %v71 = vpack.c.bf16 %v70, %v69
    %v72 = vld [vmem:[#allocation5] sm:$0xff]
    %v73 = vld [vmem:[#allocation5 + $0x8] sm:$0xff]
    %v74 = vld [vmem:[#allocation5 + $0x10] sm:$0xff]
    %v75 = vld [vmem:[#allocation5 + $0x18] sm:$0xff]
    %v76 = vld [vmem:[#allocation5 + $0x20] sm:$0xff]
    %v77 = vld [vmem:[#allocation5 + $0x28] sm:$0xff]
    %v78 = vld [vmem:[#allocation5 + $0x30] sm:$0xff]
    %v79 = vld [vmem:[#allocation5 + $0x38] sm:$0xff]
    %v80 = vld [vmem:[#allocation5 + $0x40] sm:$0xff]
    %v81 = vld [vmem:[#allocation5 + $0x48] sm:$0xff]
    %v82 = vld [vmem:[#allocation5 + $0x50] sm:$0xff]
    %v83 = vld [vmem:[#allocation5 + $0x58] sm:$0xff]
    %v84 = vld [vmem:[#allocation5 + $0x60] sm:$0xff]
    %v85 = vld [vmem:[#allocation5 + $0x68] sm:$0xff]
    %v86 = vld [vmem:[#allocation5 + $0x70] sm:$0xff]
    %v87 = vld [vmem:[#allocation5 + $0x78] sm:$0xff]
    %v88 = vld [vmem:[%s2] sm:$0x3]
    %v90 = vlaneseq
    %v91 = vshrl.u32 %v90, 7
    %v92 = vsub.s32 0, %v91
    %v93 = vrot.slane %v88, %v92
    %v94 = vlaneseq
    %v95 = vshrl.u32 %v94, 7
    %v96 = vsub.s32 1, %v95
    %v97 = vrot.slane %v88, %v96
    %v116 = vunpack.c.l.b16 %v72
    %v117 = vunpack.c.h.b16 %v72
    %v118 = vunpack.c.l.b16 %v73
    %v119 = vunpack.c.h.b16 %v73
    %v120 = vunpack.c.l.b16 %v74
    %v121 = vunpack.c.h.b16 %v74
    %v122 = vunpack.c.l.b16 %v75
    %v123 = vunpack.c.h.b16 %v75
    %v124 = vunpack.c.l.b16 %v76
    %v125 = vunpack.c.h.b16 %v76
    %v126 = vunpack.c.l.b16 %v77
    %v127 = vunpack.c.h.b16 %v77
    %v128 = vunpack.c.l.b16 %v78
    %v129 = vunpack.c.h.b16 %v78
    %v130 = vunpack.c.l.b16 %v79
    %v131 = vunpack.c.h.b16 %v79
    %v132 = vunpack.c.l.b16 %v80
    %v133 = vunpack.c.h.b16 %v80
    %v134 = vunpack.c.l.b16 %v81
    %v135 = vunpack.c.h.b16 %v81
    %v136 = vunpack.c.l.b16 %v82
    %v137 = vunpack.c.h.b16 %v82
    %v138 = vunpack.c.l.b16 %v83
    %v139 = vunpack.c.h.b16 %v83
    %v140 = vunpack.c.l.b16 %v84
    %v141 = vunpack.c.h.b16 %v84
    %v142 = vunpack.c.l.b16 %v85
    %v143 = vunpack.c.h.b16 %v85
    %v144 = vunpack.c.l.b16 %v86
    %v145 = vunpack.c.h.b16 %v86
    %v146 = vunpack.c.l.b16 %v87
    %v147 = vunpack.c.h.b16 %v87
    %v148 = vpack.c.b16 %v118, %v116
    %v149 = vpack.c.b16 %v119, %v117
    %v150 = vpack.c.b16 %v122, %v120
    %v151 = vpack.c.b16 %v123, %v121
    %v152 = vpack.c.b16 %v126, %v124
    %v153 = vpack.c.b16 %v127, %v125
    %v154 = vpack.c.b16 %v130, %v128
    %v155 = vpack.c.b16 %v131, %v129
    %v156 = vpack.c.b16 %v134, %v132
    %v157 = vpack.c.b16 %v135, %v133
    %v158 = vpack.c.b16 %v138, %v136
    %v159 = vpack.c.b16 %v139, %v137
    %v160 = vpack.c.b16 %v142, %v140
    %v161 = vpack.c.b16 %v143, %v141
    %v162 = vpack.c.b16 %v146, %v144
    %v163 = vpack.c.b16 %v147, %v145
    %180 = vmatprep.subr.bf16.mxu0 %v149
    %181 = vmatpush1.bf16.msra.mxu0 %v148
    %182 = vmatprep.subr.bf16.mxu0 %v151
    %183 = vmatpush1.bf16.msra.mxu0 %v150
    %184 = vmatprep.subr.bf16.mxu0 %v153
    %185 = vmatpush1.bf16.msra.mxu0 %v152
    %186 = vmatprep.subr.bf16.mxu0 %v155
    %187 = vmatpush1.bf16.msra.mxu0 %v154
    %188 = vmatprep.subr.bf16.mxu0 %v157
    %189 = vmatpush1.bf16.msra.mxu0 %v156
    %190 = vmatprep.subr.bf16.mxu0 %v159
    %191 = vmatpush1.bf16.msra.mxu0 %v158
    %192 = vmatprep.subr.bf16.mxu0 %v161
    %193 = vmatpush1.bf16.msra.mxu0 %v160
    %194 = vmatprep.subr.bf16.mxu0 %v163
    %195 = vmatpush1.bf16.msra.mxu0 %v162
    %196 = vmatprep.subr.bf16.mxu0 0
    %197 = vmatpush1.bf16.msra.mxu0 0
    %198 = vmatprep.subr.bf16.mxu0 0
    %199 = vmatpush1.bf16.msra.mxu0 0
    %200 = vmatprep.subr.bf16.mxu0 0
    %201 = vmatpush1.bf16.msra.mxu0 0
    %202 = vmatprep.subr.bf16.mxu0 0
    %203 = vmatpush1.bf16.msra.mxu0 0
    %204 = vmatprep.subr.bf16.mxu0 0
    %205 = vmatpush1.bf16.msra.mxu0 0
    %206 = vmatprep.subr.bf16.mxu0 0
    %207 = vmatpush1.bf16.msra.mxu0 0
    %208 = vmatprep.subr.bf16.mxu0 0
    %209 = vmatpush1.bf16.msra.mxu0 0
    %210 = vmatprep.subr.bf16.mxu0 0
    %211 = vmatpush1.bf16.msra.mxu0 0
    %212 = vmatprep.mubr.bf16.mxu0 0
    %213 = vmatmul.mubr.bf16.gmra.mrb[0].mxu0 %v71
    %v214 = vpop.f32.mrb[0].mxu0
    %v215 = vadd.f32 %v93, %v214
    %v216 = vpop.f32.mrb[0].mxu0
    %v217 = vadd.f32 %v97, %v216
    %v218 = vpop.f32.mrb[0].mxu0
    %v219 = vadd.f32 %v93, %v218
    %v220 = vpop.f32.mrb[0].mxu0
    %v221 = vadd.f32 %v97, %v220
    %222 = vdwg.mxu0
    %vm223 = vcmp.ge.f32.partialorder %v215, 0.0
    %vm224 = vcmp.ge.f32.partialorder %v217, 0.0
    %vm225 = vcmp.ge.f32.partialorder %v219, 0.0
    %vm226 = vcmp.ge.f32.partialorder %v221, 0.0
    %v227 = vmul.f32 %v215, 0.01
    %v228 = vmul.f32 %v217, 0.01
    %v229 = vmul.f32 %v219, 0.01
    %v230 = vmul.f32 %v221, 0.01
    %v231 = vsel %vm223, %v215, %v227
    %v232 = vsel %vm224, %v217, %v228
    %v233 = vsel %vm225, %v219, %v229
    %v234 = vsel %vm226, %v221, %v230
    %v235 = vadd.f32 %v231, %v232
    %236 = vadd.xlane.f32.xlu0 %v235
    %v237 = vpop.xlane.xlu0 %236
    %v238 = vadd.f32 %v233, %v234
    %239 = vadd.xlane.f32.xlu0 %v238
    %v240 = vpop.xlane.xlu0 %239
    %v241 = vrcp.pop 256.0
    %v242 = vmul.f32 %v237, %v241
    %v243 = vmul.f32 %v240, %v241
    %v244 = vsub.f32 %v231, %v242
    %v245 = vsub.f32 %v232, %v242
    %v246 = vsub.f32 %v233, %v243
    %v247 = vsub.f32 %v234, %v243
    %v248 = vmul.f32 %v244, %v244
    %v249 = vmul.f32 %v245, %v245
    %v250 = vmul.f32 %v246, %v246
    %v251 = vmul.f32 %v247, %v247
    %v252 = vadd.f32 %v248, %v249
    %253 = vadd.xlane.f32.xlu0 %v252
    %v254 = vpop.xlane.xlu0 %253
    %v255 = vadd.f32 %v250, %v251
    %256 = vadd.xlane.f32.xlu0 %v255
    %v257 = vpop.xlane.xlu0 %256
    %v258 = vmul.f32 %v254, %v241
    %v259 = vmul.f32 %v257, %v241
    %v260 = vadd.f32 %v258, 1e-05
    %v261 = vadd.f32 %v259, 1e-05
    %v262 = vrsqrt.pop %v260
    %v263 = vrsqrt.pop %v261
    %v264 = vmul.f32 %v244, %v262
    %v265 = vmul.f32 %v245, %v262
    %v266 = vmul.f32 %v246, %v263
    %v267 = vmul.f32 %v247, %v263
    %v268 = vld [vmem:[%s3] sm:$0x3]
    %v270 = vlaneseq
    %v271 = vshrl.u32 %v270, 7
    %v272 = vsub.s32 0, %v271
    %v273 = vrot.slane %v268, %v272
    %v274 = vlaneseq
    %v275 = vshrl.u32 %v274, 7
    %v276 = vsub.s32 1, %v275
    %v277 = vrot.slane %v268, %v276
    %v280 = vmul.f32 %v264, %v273
    %v281 = vmul.f32 %v265, %v277
    %v282 = vmul.f32 %v266, %v273
    %v283 = vmul.f32 %v267, %v277
    %v284 = vld [vmem:[%s4] sm:$0x3]
    %v286 = vlaneseq
    %v287 = vshrl.u32 %v286, 7
    %v288 = vsub.s32 0, %v287
    %v289 = vrot.slane %v284, %v288
    %v290 = vlaneseq
    %v291 = vshrl.u32 %v290, 7
    %v292 = vsub.s32 1, %v291
    %v293 = vrot.slane %v284, %v292
    %v296 = vadd.f32 %v280, %v289
    %v297 = vadd.f32 %v281, %v293
    %v298 = vadd.f32 %v282, %v289
    %v299 = vadd.f32 %v283, %v293
    %v300 = vpack.c.bf16 %v298, %v296
    %v301 = vpack.c.bf16 %v299, %v297
    %v302 = vld [vmem:[#allocation7] sm:$0xf]
    %v303 = vld [vmem:[#allocation7 + $0x4] sm:$0xf]
    %v304 = vld [vmem:[#allocation7 + $0x8] sm:$0xf]
    %v305 = vld [vmem:[#allocation7 + $0xc] sm:$0xf]
    %v306 = vld [vmem:[#allocation7 + $0x10] sm:$0xf]
    %v307 = vld [vmem:[#allocation7 + $0x14] sm:$0xf]
    %v308 = vld [vmem:[#allocation7 + $0x18] sm:$0xf]
    %v309 = vld [vmem:[#allocation7 + $0x1c] sm:$0xf]
    %v310 = vld [vmem:[#allocation7 + $0x20] sm:$0xf]
    %v311 = vld [vmem:[#allocation7 + $0x24] sm:$0xf]
    %v312 = vld [vmem:[#allocation7 + $0x28] sm:$0xf]
    %v313 = vld [vmem:[#allocation7 + $0x2c] sm:$0xf]
    %v314 = vld [vmem:[#allocation7 + $0x30] sm:$0xf]
    %v315 = vld [vmem:[#allocation7 + $0x34] sm:$0xf]
    %v316 = vld [vmem:[#allocation7 + $0x38] sm:$0xf]
    %v317 = vld [vmem:[#allocation7 + $0x3c] sm:$0xf]
    %v318 = vld [vmem:[#allocation7 + $0x40] sm:$0xf]
    %v319 = vld [vmem:[#allocation7 + $0x44] sm:$0xf]
    %v320 = vld [vmem:[#allocation7 + $0x48] sm:$0xf]
    %v321 = vld [vmem:[#allocation7 + $0x4c] sm:$0xf]
    %v322 = vld [vmem:[#allocation7 + $0x50] sm:$0xf]
    %v323 = vld [vmem:[#allocation7 + $0x54] sm:$0xf]
    %v324 = vld [vmem:[#allocation7 + $0x58] sm:$0xf]
    %v325 = vld [vmem:[#allocation7 + $0x5c] sm:$0xf]
    %v326 = vld [vmem:[#allocation7 + $0x60] sm:$0xf]
    %v327 = vld [vmem:[#allocation7 + $0x64] sm:$0xf]
    %v328 = vld [vmem:[#allocation7 + $0x68] sm:$0xf]
    %v329 = vld [vmem:[#allocation7 + $0x6c] sm:$0xf]
    %v330 = vld [vmem:[#allocation7 + $0x70] sm:$0xf]
    %v331 = vld [vmem:[#allocation7 + $0x74] sm:$0xf]
    %v332 = vld [vmem:[#allocation7 + $0x78] sm:$0xf]
    %v333 = vld [vmem:[#allocation7 + $0x7c] sm:$0xf]
    %v334 = vld [vmem:[%s6] sm:$0x1]
    %v336 = vlaneseq
    %v337 = vshrl.u32 %v336, 7
    %v338 = vsub.s32 0, %v337
    %v339 = vrot.slane %v334, %v338
    %v373 = vunpack.c.l.b16 %v302
    %v374 = vunpack.c.l.b16 %v303
    %v375 = vunpack.c.l.b16 %v304
    %v376 = vunpack.c.l.b16 %v305
    %v377 = vunpack.c.l.b16 %v306
    %v378 = vunpack.c.l.b16 %v307
    %v379 = vunpack.c.l.b16 %v308
    %v380 = vunpack.c.l.b16 %v309
    %v381 = vunpack.c.l.b16 %v310
    %v382 = vunpack.c.l.b16 %v311
    %v383 = vunpack.c.l.b16 %v312
    %v384 = vunpack.c.l.b16 %v313
    %v385 = vunpack.c.l.b16 %v314
    %v386 = vunpack.c.l.b16 %v315
    %v387 = vunpack.c.l.b16 %v316
    %v388 = vunpack.c.l.b16 %v317
    %v389 = vunpack.c.l.b16 %v318
    %v390 = vunpack.c.l.b16 %v319
    %v391 = vunpack.c.l.b16 %v320
    %v392 = vunpack.c.l.b16 %v321
    %v393 = vunpack.c.l.b16 %v322
    %v394 = vunpack.c.l.b16 %v323
    %v395 = vunpack.c.l.b16 %v324
    %v396 = vunpack.c.l.b16 %v325
    %v397 = vunpack.c.l.b16 %v326
    %v398 = vunpack.c.l.b16 %v327
    %v399 = vunpack.c.l.b16 %v328
    %v400 = vunpack.c.l.b16 %v329
    %v401 = vunpack.c.l.b16 %v330
    %v402 = vunpack.c.l.b16 %v331
    %v403 = vunpack.c.l.b16 %v332
    %v404 = vunpack.c.l.b16 %v333
    %v405 = vpack.c.b16 %v374, %v373
    %v406 = vpack.c.b16 %v376, %v375
    %v407 = vpack.c.b16 %v378, %v377
    %v408 = vpack.c.b16 %v380, %v379
    %v409 = vpack.c.b16 %v382, %v381
    %v410 = vpack.c.b16 %v384, %v383
    %v411 = vpack.c.b16 %v386, %v385
    %v412 = vpack.c.b16 %v388, %v387
    %v413 = vpack.c.b16 %v390, %v389
    %v414 = vpack.c.b16 %v392, %v391
    %v415 = vpack.c.b16 %v394, %v393
    %v416 = vpack.c.b16 %v396, %v395
    %v417 = vpack.c.b16 %v398, %v397
    %v418 = vpack.c.b16 %v400, %v399
    %v419 = vpack.c.b16 %v402, %v401
    %v420 = vpack.c.b16 %v404, %v403
    %437 = vmatprep.subr.bf16.mxu0 0
    %438 = vmatpush1.bf16.msra.mxu0 %v405
    %439 = vmatprep.subr.bf16.mxu0 0
    %440 = vmatpush1.bf16.msra.mxu0 %v406
    %441 = vmatprep.subr.bf16.mxu0 0
    %442 = vmatpush1.bf16.msra.mxu0 %v407
    %443 = vmatprep.subr.bf16.mxu0 0
    %444 = vmatpush1.bf16.msra.mxu0 %v408
    %445 = vmatprep.subr.bf16.mxu0 0
    %446 = vmatpush1.bf16.msra.mxu0 %v409
    %447 = vmatprep.subr.bf16.mxu0 0
    %448 = vmatpush1.bf16.msra.mxu0 %v410
    %449 = vmatprep.subr.bf16.mxu0 0
    %450 = vmatpush1.bf16.msra.mxu0 %v411
    %451 = vmatprep.subr.bf16.mxu0 0
    %452 = vmatpush1.bf16.msra.mxu0 %v412
    %453 = vmatprep.subr.bf16.mxu0 0
    %454 = vmatpush1.bf16.msra.mxu0 %v413
    %455 = vmatprep.subr.bf16.mxu0 0
    %456 = vmatpush1.bf16.msra.mxu0 %v414
    %457 = vmatprep.subr.bf16.mxu0 0
    %458 = vmatpush1.bf16.msra.mxu0 %v415
    %459 = vmatprep.subr.bf16.mxu0 0
    %460 = vmatpush1.bf16.msra.mxu0 %v416
    %461 = vmatprep.subr.bf16.mxu0 0
    %462 = vmatpush1.bf16.msra.mxu0 %v417
    %463 = vmatprep.subr.bf16.mxu0 0
    %464 = vmatpush1.bf16.msra.mxu0 %v418
    %465 = vmatprep.subr.bf16.mxu0 0
    %466 = vmatpush1.bf16.msra.mxu0 %v419
    %467 = vmatprep.subr.bf16.mxu0 0
    %468 = vmatpush1.bf16.msra.mxu0 %v420
    %469 = vmatprep.mubr.bf16.mxu0 %v301
    %470 = vmatmul.mubr.bf16.gmra.mrb[0].mxu0 %v300
    %v471 = vpop.f32.mrb[0].mxu0
    %v472 = vadd.f32 %v339, %v471
    %v473 = vpop.f32.mrb[0].mxu0
    %v474 = vpop.f32.mrb[0].mxu0
    %v475 = vadd.f32 %v339, %v474
    %v476 = vpop.f32.mrb[0].mxu0
    %477 = vdwg.mxu0
    %v478 = vmul.f32 %v296, %v296
    %v479 = vmul.f32 %v297, %v297
    %v480 = vmul.f32 %v298, %v298
    %v481 = vmul.f32 %v299, %v299
    %v482 = vadd.f32 %v478, %v479
    %483 = vadd.xlane.f32.xlu0 %v482
    %v484 = vpop.xlane.xlu0 %483
    %v485 = vadd.f32 %v480, %v481
    %486 = vadd.xlane.f32.xlu0 %v485
    %v487 = vpop.xlane.xlu0 %486
    %v488 = vmul.f32 %v472, %v472
    %v489 = vmul.f32 %v475, %v475
    %490 = vadd.xlane.f32.xlu0 %v488
    %v491 = vpop.xlane.xlu0 %490
    %492 = vadd.xlane.f32.xlu0 %v489
    %v493 = vpop.xlane.xlu0 %492
    %v494 = vadd.f32 %v484, %v491
    %v495 = vadd.f32 %v487, %v493
    %v496 = vmax.f32 %v494, 1e-24
    %v497 = vmax.f32 %v495, 1e-24
    %v498 = vrsqrt.pop %v496
    %v499 = vrsqrt.pop %v497
    %v500 = vmul.f32 %v296, %v498
    %v501 = vmul.f32 %v297, %v498
    %v502 = vmul.f32 %v298, %v499
    %v503 = vmul.f32 %v299, %v499
    %v508 = vcombine.low %v500, %v501
    %v509 = vcombine.high %v500, %v501
    %v510 = vcombine.low %v502, %v503
    %v511 = vcombine.high %v502, %v503
    %516 = vst [vmem:[#allocation8] sm:$0xff] %v508
    %517 = vst [vmem:[#allocation8 + $0xc] sm:$0xff] %v509
    %518 = vst [vmem:[#allocation8 + $0x18] sm:$0xff] %v510
    %519 = vst [vmem:[#allocation8 + $0x24] sm:$0xff] %v511
    %v520 = vmul.f32 %v472, %v498
    %v521 = vmul.f32 %v475, %v499
    %v524 = vcombine.high %v520, %v520
    %v525 = vcombine.high %v521, %v521
    %528 = vst [vmem:[#allocation8 + $0x8] sm:$0xf] %v520
    %529 = vst [vmem:[#allocation8 + $0x14] sm:$0xf] %v524
    %530 = vst [vmem:[#allocation8 + $0x20] sm:$0xf] %v521
    %531 = vst [vmem:[#allocation8 + $0x2c] sm:$0xf] %v525
    // Predicated region
    $region42: #{tpu_custom_call.1} parent=1 // pred_check
      _
    $region43: #{tpu_custom_call.1} parent=1 // pred_check_branch
      %533 = sbr.rel (0) target = $region45
    $region44: #{tpu_custom_call.1} parent=1 // pred_region
      %s535 = ssub.s32 768, 192
      %536 = vsyncadd [#allocation4], %s535
      %s537 = sshll.u32 [#allocation8], 4
      %s538 = int_to_ptr.vmem [resolvable:$true] %s537
      %543 = dma.vmem_to_hbm [thread:$0]  %s538, 192, %s7, [#allocation4], 192, 192, 12
    $region45: #{tpu_custom_call.1} parent=1 // pred_fallthru
      _
    // Predicated region
    $region46: #{tpu_custom_call.1} parent=1 // pred_check
      _
    $region47: #{tpu_custom_call.1} parent=1 // pred_check_branch
      %545 = sbr.rel (0) target = $region49
    $region48: #{tpu_custom_call.1} parent=1 // pred_region
      %546 = dma.done [#allocation4], 768
    $region49: #{tpu_custom_call.1} parent=1 // pred_fallthru
      _
    %547 = vsyncpa [#allocation3], 1
    %548 = vsyncpa [#allocation6], 1
    %549 = vsyncpa [#allocation4], 1

</llo_original>
